<compile_context>
chip_gen: v7x
topology: tpu7x:2x2x1
jax: 0.10.0
libtpu: 0.0.40
codegen_flags: <defaults>
</compile_context>

<pallas_src>
import functools

import jax
import jax.numpy as jnp
from jax.experimental import pallas as pl
from jax.experimental.pallas import tpu as pltpu

ALPHA = 0.2                     # LeakyReLU negative slope
BN_EPS = 1e-5                   # PyTorch BatchNorm2d default
VMEM_LIMIT = 40 * 1024 * 1024   # raised scoped VMEM; < 64 MiB, safe on v7x too


# --------------------------- tiling helpers ---------------------------------

def _pick_tile(dim, target, mult):
    """Largest multiple of `mult` that divides `dim` and is <= target.
    Falls back to the full dimension (always legal) if dim % mult != 0."""
    if dim % mult != 0:
        return dim
    t = min(target, dim)
    t = max((t // mult) * mult, mult)
    while dim % t != 0:
        t -= mult
    return t


def _pad_rows(a, mult=8):
    m = a.shape[0]
    pad = (-m) % mult
    if pad:
        a = jnp.pad(a, ((0, pad), (0, 0)))
    return a


# --------------------------- Pallas kernels ---------------------------------

def _matmul_kernel(x_ref, w_ref, *out_refs, act, single_k, with_stats):
    """Tiled matmul, f32 accumulation, fused activation.
    Optionally emits per-row-tile column sums / sums-of-squares (BN stats)."""
    if with_stats:
        o_ref, sum_ref, sq_ref = out_refs[0], out_refs[1], out_refs[2]
        rest = out_refs[3:]
    else:
        o_ref = out_refs[0]
        sum_ref = sq_ref = None
        rest = out_refs[1:]
    acc_ref = rest[0] if rest else None

    def finish(r):
        if with_stats:
            tm_, tn_ = r.shape
            rr = r.reshape(tm_ // 8, 8, tn_)          # fold rows onto 8 sublanes
            sum_ref[...] = jnp.sum(rr, axis=0)[None]
            sq_ref[...] = jnp.sum(rr * rr, axis=0)[None]
        if act == "lrelu":
            r = jnp.where(r >= 0, r, ALPHA * r)
        elif act == "relu":
            r = jnp.maximum(r, 0.0)
        elif act == "tanh":
            r = jnp.tanh(r)
        o_ref[...] = r.astype(o_ref.dtype)

    if single_k:
        # Single K tile: no accumulator scratch, straight-line dot + epilogue.
        finish(jnp.dot(x_ref[...], w_ref[...], preferred_element_type=jnp.float32))
    else:
        @pl.when(pl.program_id(2) == 0)
        def _():
            acc_ref[...] = jnp.zeros_like(acc_ref)

        acc_ref[...] += jnp.dot(x_ref[...], w_ref[...],
                                preferred_element_type=jnp.float32)

        @pl.when(pl.program_id(2) == pl.num_programs(2) - 1)
        def _():
            finish(acc_ref[...])


def pallas_matmul(x, w, act=None, with_stats=False, out_dtype=jnp.bfloat16,
                  tm_target=4096, tn_target=1024, tk_target=2048):
    """x:(M,K) @ w:(K,N) on the MXU (bf16 inputs, f32 accumulation).

    Returns y (and, if with_stats, per-row-tile partial column sums / sumsq of
    the pre-activation result, shaped (grid_m, 8, N))."""
    M, K = x.shape
    K2, N = w.shape
    assert K == K2, (x.shape, w.shape)
    tm = _pick_tile(M, tm_target, 8)
    tn = _pick_tile(N, tn_target, 128)
    tk = _pick_tile(K, tk_target, 128)
    gm, gn, gk = M // tm, N // tn, K // tk
    single_k = gk == 1

    kernel = functools.partial(_matmul_kernel, act=act, single_k=single_k,
                               with_stats=with_stats)

    if with_stats:
        out_shape = (jax.ShapeDtypeStruct((M, N), out_dtype),
                     jax.ShapeDtypeStruct((gm, 8, N), jnp.float32),
                     jax.ShapeDtypeStruct((gm, 8, N), jnp.float32))
        out_specs = (pl.BlockSpec((tm, tn), lambda i, j, k: (i, j)),
                     pl.BlockSpec((1, 8, tn), lambda i, j, k: (i, 0, j)),
                     pl.BlockSpec((1, 8, tn), lambda i, j, k: (i, 0, j)))
    else:
        out_shape = jax.ShapeDtypeStruct((M, N), out_dtype)
        out_specs = pl.BlockSpec((tm, tn), lambda i, j, k: (i, j))

    scratch = [] if single_k else [pltpu.VMEM((tm, tn), jnp.float32)]

    return pl.pallas_call(
        kernel,
        out_shape=out_shape,
        grid_spec=pltpu.PrefetchScalarGridSpec(
            num_scalar_prefetch=0, grid=(gm, gn, gk),
            in_specs=[pl.BlockSpec((tm, tk), lambda i, j, k: (i, k)),
                      pl.BlockSpec((tk, tn), lambda i, j, k: (k, j))],
            out_specs=out_specs,
            scratch_shapes=scratch),
        compiler_params=pltpu.CompilerParams(
            dimension_semantics=("parallel", "parallel", "arbitrary"),
            vmem_limit_bytes=VMEM_LIMIT),
    )(x.astype(jnp.bfloat16), w.astype(jnp.bfloat16))


def _affine_lrelu_kernel(y_ref, s_ref, b_ref, o_ref):
    """out = LeakyReLU(y * scale + shift)   (BatchNorm folded into scale/shift)."""
    y = y_ref[...] * s_ref[...] + b_ref[...]          # bf16 * f32 -> f32
    o_ref[...] = jnp.where(y >= 0, y, ALPHA * y).astype(o_ref.dtype)


def pallas_affine_lrelu(y, scale, shift):
    M, C = y.shape
    tm = _pick_tile(M, 4096, 8)
    return pl.pallas_call(
        _affine_lrelu_kernel,
        out_shape=jax.ShapeDtypeStruct((M, C), jnp.bfloat16),
        grid_spec=pltpu.PrefetchScalarGridSpec(
            num_scalar_prefetch=0, grid=(M // tm,),
            in_specs=[pl.BlockSpec((tm, C), lambda i: (i, 0)),
                      pl.BlockSpec((1, C), lambda i: (0, 0)),
                      pl.BlockSpec((1, C), lambda i: (0, 0))],
            out_specs=pl.BlockSpec((tm, C), lambda i: (i, 0))),
        compiler_params=pltpu.CompilerParams(dimension_semantics=("parallel",)),
    )(y, scale, shift)


# --------------------------- glue (plain JAX) --------------------------------

def im2col(x_nhwc, k=4, s=2, p=1):
    """k x k stride-s patches of a padded NHWC tensor (row order: kh, kw, cin)."""
    N, H, W, C = x_nhwc.shape
    Ho = (H + 2 * p - k) // s + 1
    Wo = (W + 2 * p - k) // s + 1
    xp = jnp.pad(x_nhwc, ((0, 0), (p, p), (p, p), (0, 0)))
    cols = [xp[:, kh:kh + s * Ho:s, kw:kw + s * Wo:s, :]
            for kh in range(k) for kw in range(k)]
    patches = jnp.stack(cols, axis=3)               # (N, Ho, Wo, k*k, C)
    return patches.reshape(N * Ho * Wo, k * k * C), N, Ho, Wo


def im2col3(x_nhwc):
    """3x3 stride-1 patches of the 1-padded input (for ConvTranspose k4 s2 p1)."""
    N, H, W, C = x_nhwc.shape
    xp = jnp.pad(x_nhwc, ((0, 0), (1, 1), (1, 1), (0, 0)))
    cols = [xp[:, dh:dh + H, dw:dw + W, :] for dh in range(3) for dw in range(3)]
    patches = jnp.stack(cols, axis=3)               # (N, H, W, 9, C)
    return patches.reshape(N * H * W, 9 * C)


def conv_weight_matrix(w_pt):
    """PyTorch Conv weight (Cout, Cin, kh, kw) -> (kh*kw*Cin, Cout) matrix."""
    Cout, Cin, kh, kw = w_pt.shape
    return jnp.transpose(w_pt, (2, 3, 1, 0)).reshape(kh * kw * Cin, Cout)


# (output row parity, 3x3-patch offset) -> ConvTranspose kernel tap index.
_TAPS = {(0, 0): 3, (0, 1): 1, (1, 1): 2, (1, 2): 0}


def deconv_weight9(w_pt):
    """ConvTranspose2d(k=4,s=2,p=1) weight (Cin,Cout,4,4) -> (9*Cin, 4*Cout)
    matrix for the 3x3-patch sub-pixel decomposition (unused taps are zero)."""
    Cin, Cout = w_pt.shape[0], w_pt.shape[1]
    w9 = jnp.zeros((3, 3, Cin, 2, 2, Cout), w_pt.dtype)
    for (r, dh), kh in _TAPS.items():
        for (c, dw), kw in _TAPS.items():
            w9 = w9.at[dh, dw, :, r, c, :].set(w_pt[:, :, kh, kw])
    return w9.reshape(9 * Cin, 4 * Cout)


def conv_block(x_nhwc, w_mat, bn=None):
    """Conv2d(k=4,s=2,p=1,bias=False) [+ BatchNorm2d] + LeakyReLU(0.2).
    `w_mat` is the prepacked (16*Cin, Cout) bf16 weight matrix."""
    Cout = w_mat.shape[1]
    patches, N, Ho, Wo = im2col(x_nhwc, k=4, s=2, p=1)
    if bn is None:
        y = pallas_matmul(patches, w_mat, act="lrelu", out_dtype=jnp.bfloat16)
        return y.reshape(N, Ho, Wo, Cout)
    gamma, beta = bn
    # Pre-activation y in bf16 + BN partial sums computed in f32 from the
    # accumulator inside the matmul epilogue (no separate stats pass over y).
    y, psum, psq = pallas_matmul(patches, w_mat, act=None, with_stats=True,
                                 out_dtype=jnp.bfloat16)
    M = y.shape[0]
    mean = psum.sum(axis=(0, 1)) / M
    var = jnp.maximum(psq.sum(axis=(0, 1)) / M - mean * mean, 0.0)  # biased var
    inv = jax.lax.rsqrt(var + BN_EPS)
    scale = (gamma * inv)[None, :].astype(jnp.float32)
    shift = (beta - mean * gamma * inv)[None, :].astype(jnp.float32)
    y = pallas_affine_lrelu(y, scale, shift)
    return y.reshape(N, Ho, Wo, Cout)


def deconv_block(x_nhwc, w9, act="relu"):
    """ConvTranspose2d(k=4,s=2,p=1,bias=False) + ReLU / Tanh.
    `w9` is the prepacked (9*Cin, 4*Cout) bf16 sub-pixel weight matrix."""
    Cout = w9.shape[1] // 4
    N, Hi, Wi, _ = x_nhwc.shape
    patches = im2col3(x_nhwc)                       # (N*Hi*Wi, 9*Cin)
    out_dtype = jnp.float32 if act == "tanh" else jnp.bfloat16
    y = pallas_matmul(patches, w9, act=act, out_dtype=out_dtype)   # (M, 4*Cout)
    y = y.reshape(N, Hi, Wi, 2, 2, Cout)
    y = jnp.transpose(y, (0, 1, 3, 2, 4, 5)).reshape(N, 2 * Hi, 2 * Wi, Cout)
    return y


# --------------------------- weight prepacking --------------------------------

def prepack_params(params):
    """One-time conversion of PyTorch-layout weights into matmul-ready bf16
    matrices.  Call ONCE, OUTSIDE the jitted forward (the two bottleneck
    weights are ~590 MB each; transposing/padding them per call is the single
    largest avoidable cost)."""
    p = {}
    for i in range(1, 6):
        p[f'ew{i}m'] = conv_weight_matrix(params[f'ew{i}']).astype(jnp.bfloat16)
    for i in range(2, 6):
        p[f'g{i}'] = params[f'g{i}'].astype(jnp.float32)
        p[f'b{i}'] = params[f'b{i}'].astype(jnp.float32)
    # Bottleneck Conv2d(512->4000,(9,16)):  (73728, 4000) -> lane-pad to 4096.
    w6 = jnp.transpose(params['ew6'], (2, 3, 1, 0)).reshape(9 * 16 * 512, 4000)
    p['w6m'] = jnp.pad(w6, ((0, 0), (0, 96))).astype(jnp.bfloat16)
    # Bottleneck ConvT(4000->512,(9,16)):  (4000, 73728) -> K zero-pad to 4096.
    wd1 = jnp.transpose(params['dw1'], (0, 2, 3, 1)).reshape(4000, 9 * 16 * 512)
    p['wd1m'] = jnp.pad(wd1, ((0, 96), (0, 0))).astype(jnp.bfloat16)
    for i in range(2, 7):
        p[f'dw{i}m'] = deconv_weight9(params[f'dw{i}']).astype(jnp.bfloat16)
    return p


# --------------------------- forward ------------------------------------------

def generator_forward(x_nchw, p):
    N, _, H, W = x_nchw.shape
    # The (9,16) bottleneck conv requires a 288 x 512 input (1x1 bottleneck).
    assert H == 288 and W == 512, (H, W)
    x = jnp.transpose(x_nchw, (0, 2, 3, 1)).astype(jnp.bfloat16)   # NHWC bf16

    # ---- encoder ----
    x = conv_block(x, p['ew1m'])                                   # 64  @ 144x256
    x = conv_block(x, p['ew2m'], bn=(p['g2'], p['b2']))            # 64  @ 72x128
    x = conv_block(x, p['ew3m'], bn=(p['g3'], p['b3']))            # 128 @ 36x64
    x = conv_block(x, p['ew4m'], bn=(p['g4'], p['b4']))            # 256 @ 18x32
    x = conv_block(x, p['ew5m'], bn=(p['g5'], p['b5']))            # 512 @ 9x16

    # Conv2d(512 -> 4000, kernel=(9,16)) on a 9x16 map == mat-vec over 73728 in.
    # 8 MiB weight blocks (tk=4096, tn=1024); gn=4 keeps megacore parallelism.
    xf = _pad_rows(x.reshape(N, 9 * 16 * 512))
    z = pallas_matmul(xf, p['w6m'], act="lrelu", out_dtype=jnp.bfloat16,
                      tk_target=4096, tn_target=1024)          # (Np, 4096)
    # Columns 4000:4096 of z are exactly zero (zero weight cols, LReLU(0)=0),
    # and rows 4000:4096 of wd1m are zero, so z feeds the next mat-vec as-is.

    # ---- decoder ----
    # ConvTranspose2d(4000 -> 512, kernel=(9,16)) from a 1x1 map == mat-vec.
    y = pallas_matmul(z, p['wd1m'], act="relu", out_dtype=jnp.bfloat16,
                      tk_target=4096, tn_target=1024)[:N]
    y = y.reshape(N, 9, 16, 512)

    y = deconv_block(y, p['dw2m'], act="relu")      # 256 @ 18x32
    y = deconv_block(y, p['dw3m'], act="relu")      # 128 @ 36x64
    y = deconv_block(y, p['dw4m'], act="relu")      # 64  @ 72x128
    y = deconv_block(y, p['dw5m'], act="relu")      # 32  @ 144x256
    y = deconv_block(y, p['dw6m'], act="tanh")      # 3   @ 288x512
    return jnp.transpose(y, (0, 3, 1, 2))           # back to NCHW, f32


# --------------------------- self checks & demo ------------------------------

def _lrelu(x):
    return jnp.where(x >= 0, x, ALPHA * x)


def _self_check():
    """Tiny-shape checks of the conv / deconv / BN lowering against lax refs."""
    ks = jax.random.split(jax.random.PRNGKey(1), 8)
    f32 = jnp.float32

    def conv_ref(x, w):
        return jax.lax.conv_general_dilated(
            x.astype(jnp.bfloat16).astype(f32),
            jnp.transpose(w, (2, 3, 1, 0)).astype(jnp.bfloat16).astype(f32),
            (2, 2), [(1, 1), (1, 1)], dimension_numbers=("NHWC", "HWIO", "NHWC"))

    # Conv2d(k=4,s=2,p=1) + LeakyReLU
    x = jax.random.normal(ks[0], (2, 8, 8, 8), f32)
    w = 0.1 * jax.random.normal(ks[1], (16, 8, 4, 4), f32)
    got = conv_block(x.astype(jnp.bfloat16),
                     conv_weight_matrix(w).astype(jnp.bfloat16)).astype(f32)
    ref = _lrelu(conv_ref(x, w))
    assert jnp.allclose(got, ref, atol=3e-2), float(jnp.max(jnp.abs(got - ref)))

    # Conv2d + BatchNorm (batch stats) + LeakyReLU
    xb = jax.random.normal(ks[2], (2, 8, 8, 8), f32)
    wb = 0.1 * jax.random.normal(ks[3], (16, 8, 4, 4), f32)
    gamma = 1.0 + 0.1 * jax.random.normal(ks[4], (16,), f32)
    beta = 0.1 * jax.random.normal(ks[5], (16,), f32)
    got = conv_block(xb.astype(jnp.bfloat16),
                     conv_weight_matrix(wb).astype(jnp.bfloat16),
                     bn=(gamma, beta)).astype(f32)
    yr = conv_ref(xb, wb)
    mean = yr.mean(axis=(0, 1, 2))
    var = yr.var(axis=(0, 1, 2))
    ref = _lrelu((yr - mean) * jax.lax.rsqrt(var + BN_EPS) * gamma + beta)
    assert jnp.allclose(got, ref, atol=6e-2), float(jnp.max(jnp.abs(got - ref)))

    # ConvTranspose2d(k=4,s=2,p=1) + ReLU
    xt = jax.random.normal(ks[6], (2, 5, 6, 8), f32)
    wt = 0.1 * jax.random.normal(ks[7], (8, 16, 4, 4), f32)
    got = deconv_block(xt.astype(jnp.bfloat16),
                       deconv_weight9(wt).astype(jnp.bfloat16),
                       act="relu").astype(f32)
    ker = jnp.transpose(jnp.flip(wt, axis=(2, 3)), (2, 3, 0, 1))
    ref = jax.lax.conv_general_dilated(
        xt.astype(jnp.bfloat16).astype(f32),
        ker.astype(jnp.bfloat16).astype(f32),
        (1, 1), [(2, 2), (2, 2)], lhs_dilation=(2, 2),
        dimension_numbers=("NHWC", "HWIO", "NHWC"))
    ref = jnp.maximum(ref, 0.0)
    assert jnp.allclose(got, ref, atol=3e-2), float(jnp.max(jnp.abs(got - ref)))


if __name__ == "__main__":
    _self_check()

    key = jax.random.PRNGKey(0)
    ks = jax.random.split(key, 16)
    f32, bf16 = jnp.float32, jnp.bfloat16
    params = {
        # Conv weights in PyTorch layout (Cout, Cin, kh, kw).
        'ew1': 0.02 * jax.random.normal(ks[0], (64, 3, 4, 4), f32),
        'ew2': 0.02 * jax.random.normal(ks[1], (64, 64, 4, 4), f32),
        'g2': jnp.ones((64,), f32), 'b2': jnp.zeros((64,), f32),
        'ew3': 0.02 * jax.random.normal(ks[2], (128, 64, 4, 4), f32),
        'g3': jnp.ones((128,), f32), 'b3': jnp.zeros((128,), f32),
        'ew4': 0.02 * jax.random.normal(ks[3], (256, 128, 4, 4), f32),
        'g4': jnp.ones((256,), f32), 'b4': jnp.zeros((256,), f32),
        'ew5': 0.02 * jax.random.normal(ks[4], (512, 256, 4, 4), f32),
        'g5': jnp.ones((512,), f32), 'b5': jnp.zeros((512,), f32),
        # Bottleneck conv / deconv weights are ~295M params each -> keep bf16.
        'ew6': 0.02 * jax.random.normal(ks[5], (4000, 512, 9, 16), bf16),
        # ConvTranspose weights in PyTorch layout (Cin, Cout, kh, kw).
        'dw1': 0.02 * jax.random.normal(ks[6], (4000, 512, 9, 16), bf16),
        'dw2': 0.02 * jax.random.normal(ks[7], (512, 256, 4, 4), f32),
        'dw3': 0.02 * jax.random.normal(ks[8], (256, 128, 4, 4), f32),
        'dw4': 0.02 * jax.random.normal(ks[9], (128, 64, 4, 4), f32),
        'dw5': 0.02 * jax.random.normal(ks[10], (64, 32, 4, 4), f32),
        'dw6': 0.02 * jax.random.normal(ks[11], (32, 3, 4, 4), f32),
    }

    # One-time prepack of all weights (outside the jitted forward).
    packed = jax.jit(prepack_params)(params)
    packed = jax.block_until_ready(packed)

    # Input spatial size fixed at 288x512 by the (9,16) bottleneck; batch = 1.
    x = jax.random.normal(ks[12], (1, 3, 288, 512), f32)

    out = jax.jit(generator_forward)(x, packed)
    out = jax.block_until_ready(out)

    assert out.shape == (1, 3, 288, 512), out.shape
    assert bool(jnp.all(jnp.isfinite(out)))
    assert bool(jnp.all(jnp.abs(out) <= 1.0))   # tanh output range
    print("KERNEL_OK")
</pallas_src>

<mosaic_0001>
module attributes {stable_mosaic.version = 11 : i64} {
  func.func @_matmul_kernel(%arg0: i32, %arg1: i32, %arg2: i32, %arg3: memref<32x128xbf16, #tpu.memory_space<vmem>>, %arg4: memref<128x16xbf16, #tpu.memory_space<vmem>>, %arg5: memref<32x16xbf16, #tpu.memory_space<vmem>>) attributes {dimension_semantics = [#tpu.dimension_semantics<parallel>, #tpu.dimension_semantics<parallel>, #tpu.dimension_semantics<arbitrary>], iteration_bounds = array<i64: 1, 1, 1>, scalar_prefetch = 0 : i64, scratch_operands = 0 : i64, tpu.core_type = #tpu.core_type<tc>, window_params = [{transform_indices = @transform_0, window_bounds = array<i64: 32, 128>}, {transform_indices = @transform_1, window_bounds = array<i64: 128, 16>}, {transform_indices = @transform_2, window_bounds = array<i64: 32, 16>}]} {
    %c0 = arith.constant 0 : index
    %c0_0 = arith.constant 0 : index
    %0 = vector.load %arg3[%c0, %c0_0] : memref<32x128xbf16, #tpu.memory_space<vmem>>, vector<32x128xbf16>
    %c0_1 = arith.constant 0 : index
    %c0_2 = arith.constant 0 : index
    %1 = vector.load %arg4[%c0_1, %c0_2] : memref<128x16xbf16, #tpu.memory_space<vmem>>, vector<128x16xbf16>
    %cst = arith.constant dense<0.000000e+00> : vector<32x16xf32>
    %2 = tpu.matmul %0, %1, %cst {dimension_numbers = #tpu.dot_dimension_numbers<[1], [0], [0], [1], [0, 0, 1, 1], [], []>} : vector<32x128xbf16>, vector<128x16xbf16>, vector<32x16xf32> -> vector<32x16xf32>
    %cst_3 = arith.constant 0.000000e+00 : f32
    %3 = vector.broadcast %cst_3 : f32 to vector<32x16xf32>
    %4 = arith.cmpf oge, %2, %3 : vector<32x16xf32>
    %cst_4 = arith.constant 2.000000e-01 : f32
    %5 = vector.broadcast %cst_4 : f32 to vector<32x16xf32>
    %6 = arith.mulf %5, %2 : vector<32x16xf32>
    %7 = arith.select %4, %2, %6 : vector<32x16xi1>, vector<32x16xf32>
    %8 = arith.truncf %7 : vector<32x16xf32> to vector<32x16xbf16>
    %c0_5 = arith.constant 0 : index
    %c0_6 = arith.constant 0 : index
    %9 = vector.load %arg5[%c0_5, %c0_6] : memref<32x16xbf16, #tpu.memory_space<vmem>>, vector<32x16xbf16>
    tpu.vector_store %arg5[%c0_5, %c0_6], %8 {strides = array<i32>} : memref<32x16xbf16, #tpu.memory_space<vmem>>, vector<32x16xbf16>,
    return
  }
  func.func @transform_0(%arg0: i32, %arg1: i32, %arg2: i32) -> (i32, i32) {
    %c0_i32 = arith.constant 0 : i32
    return %arg0, %arg2 : i32, i32
  }
  func.func @transform_1(%arg0: i32, %arg1: i32, %arg2: i32) -> (i32, i32) {
    %c0_i32 = arith.constant 0 : i32
    return %arg2, %arg1 : i32, i32
  }
  func.func @transform_2(%arg0: i32, %arg1: i32, %arg2: i32) -> (i32, i32) {
    %c0_i32 = arith.constant 0 : i32
    return %arg0, %arg1 : i32, i32
  }
}

</mosaic_0001>

<llo_original>
// kernel: tpu_custom_call.1
$region0: #{tpu_custom_call.1}
  #allocation0 [shape = 'u32[]', space=smem, size = 0x4, offset = 0x4, fixed_abs, tag = 'smem constant byte address 0x4 - core index']
  #allocation1 [shape = 'u32[144,128]{1,0:T(1,128)}', space=vmem, size = 0x12000, scoped, tag = 'internal scratch']
  %s0 = inlined_call_operand.vmem [shape: bf16[32,128], index: 0, kind: input, shape index: {}]
  %s1 = inlined_call_operand.vmem [shape: bf16[128,16], index: 1, kind: input, shape index: {}]
  %s2 = inlined_call_operand.vmem [shape: bf16[32,16], index: 2, kind: output, shape index: {}]
  %s3 = sld [smem:[#allocation0]]
  $region18: #{tpu_custom_call.1} parent=0
    _
  %s5 = ssub.s32 1, %s3
  %s6 = scalar_select 0, %s5, %s3
  // Predicated region
  $region2: #{tpu_custom_call.1} parent=0 // pred_check
    _
  $region3: #{tpu_custom_call.1} parent=0 // pred_check_branch
    %8 = sbr.rel (0) target = $region5
  $region4: #{tpu_custom_call.1} parent=0 // pred_region
    _
  $region5: #{tpu_custom_call.1} parent=0 // pred_fallthru
    _
  // Predicated region
  $region6: #{tpu_custom_call.1} parent=0 // pred_check
    _
  $region7: #{tpu_custom_call.1} parent=0 // pred_check_branch
    %10 = sbr.rel (0) target = $region9
  $region8: #{tpu_custom_call.1} parent=0 // pred_region
    _
  $region9: #{tpu_custom_call.1} parent=0 // pred_fallthru
    _
  %v12 = vld [vmem:[%s0] sm:$0xf]
  %v13 = vld [vmem:[%s0 + $0x4] sm:$0xf]
  %v14 = vld [vmem:[%s0 + $0x8] sm:$0xf]
  %v15 = vld [vmem:[%s0 + $0xc] sm:$0xf]
  %v16 = vld [vmem:[%s1] sm:$0xf]
  %v17 = vld [vmem:[%s1 + $0x4] sm:$0xf]
  %v18 = vld [vmem:[%s1 + $0x8] sm:$0xf]
  %v19 = vld [vmem:[%s1 + $0xc] sm:$0xf]
  %v20 = vld [vmem:[%s1 + $0x10] sm:$0xf]
  %v21 = vld [vmem:[%s1 + $0x14] sm:$0xf]
  %v22 = vld [vmem:[%s1 + $0x18] sm:$0xf]
  %v23 = vld [vmem:[%s1 + $0x1c] sm:$0xf]
  %v24 = vld [vmem:[%s1 + $0x20] sm:$0xf]
  %v25 = vld [vmem:[%s1 + $0x24] sm:$0xf]
  %v26 = vld [vmem:[%s1 + $0x28] sm:$0xf]
  %v27 = vld [vmem:[%s1 + $0x2c] sm:$0xf]
  %v28 = vld [vmem:[%s1 + $0x30] sm:$0xf]
  %v29 = vld [vmem:[%s1 + $0x34] sm:$0xf]
  %v30 = vld [vmem:[%s1 + $0x38] sm:$0xf]
  %v31 = vld [vmem:[%s1 + $0x3c] sm:$0xf]
  %v36 = vunpack.c.l.b16 %v12
  %v37 = vunpack.c.l.b16 %v13
  %v38 = vunpack.c.l.b16 %v14
  %v39 = vunpack.c.l.b16 %v15
  %v40 = vpack.c.b16 %v37, %v36
  %v41 = vpack.c.b16 %v39, %v38
  %v60 = vunpack.c.l.b16 %v16
  %v61 = vunpack.c.l.b16 %v17
  %v62 = vunpack.c.l.b16 %v18
  %v63 = vunpack.c.l.b16 %v19
  %v64 = vunpack.c.l.b16 %v20
  %v65 = vunpack.c.l.b16 %v21
  %v66 = vunpack.c.l.b16 %v22
  %v67 = vunpack.c.l.b16 %v23
  %v68 = vunpack.c.l.b16 %v24
  %v69 = vunpack.c.l.b16 %v25
  %v70 = vunpack.c.l.b16 %v26
  %v71 = vunpack.c.l.b16 %v27
  %v72 = vunpack.c.l.b16 %v28
  %v73 = vunpack.c.l.b16 %v29
  %v74 = vunpack.c.l.b16 %v30
  %v75 = vunpack.c.l.b16 %v31
  %v76 = vpack.c.b16 %v61, %v60
  %v77 = vpack.c.b16 %v63, %v62
  %v78 = vpack.c.b16 %v65, %v64
  %v79 = vpack.c.b16 %v67, %v66
  %v80 = vpack.c.b16 %v69, %v68
  %v81 = vpack.c.b16 %v71, %v70
  %v82 = vpack.c.b16 %v73, %v72
  %v83 = vpack.c.b16 %v75, %v74
  %92 = vmatprep.subr.bf16.mxu0 0
  %93 = vmatpush1.bf16.msra.mxu0 %v76
  %94 = vmatprep.subr.bf16.mxu0 0
  %95 = vmatpush1.bf16.msra.mxu0 %v77
  %96 = vmatprep.subr.bf16.mxu0 0
  %97 = vmatpush1.bf16.msra.mxu0 %v78
  %98 = vmatprep.subr.bf16.mxu0 0
  %99 = vmatpush1.bf16.msra.mxu0 %v79
  %100 = vmatprep.subr.bf16.mxu0 0
  %101 = vmatpush1.bf16.msra.mxu0 %v80
  %102 = vmatprep.subr.bf16.mxu0 0
  %103 = vmatpush1.bf16.msra.mxu0 %v81
  %104 = vmatprep.subr.bf16.mxu0 0
  %105 = vmatpush1.bf16.msra.mxu0 %v82
  %106 = vmatprep.subr.bf16.mxu0 0
  %107 = vmatpush1.bf16.msra.mxu0 %v83
  %108 = vmatprep.subr.bf16.mxu0 0
  %109 = vmatpush1.bf16.msra.mxu0 0
  %110 = vmatprep.subr.bf16.mxu0 0
  %111 = vmatpush1.bf16.msra.mxu0 0
  %112 = vmatprep.subr.bf16.mxu0 0
  %113 = vmatpush1.bf16.msra.mxu0 0
  %114 = vmatprep.subr.bf16.mxu0 0
  %115 = vmatpush1.bf16.msra.mxu0 0
  %116 = vmatprep.subr.bf16.mxu0 0
  %117 = vmatpush1.bf16.msra.mxu0 0
  %118 = vmatprep.subr.bf16.mxu0 0
  %119 = vmatpush1.bf16.msra.mxu0 0
  %120 = vmatprep.subr.bf16.mxu0 0
  %121 = vmatpush1.bf16.msra.mxu0 0
  %122 = vmatprep.subr.bf16.mxu0 0
  %123 = vmatpush1.bf16.msra.mxu0 0
  %124 = vmatprep.mubr.bf16.mxu0 0
  %125 = vmatmul.mubr.bf16.gmra.mrb[0].mxu0 %v40
  %v126 = vpop.f32.mrb[0].mxu0
  %v127 = vadd.f32 0.0, %v126
  %v128 = vpop.f32.mrb[0].mxu0
  %v129 = vpop.f32.mrb[0].mxu0
  %v130 = vadd.f32 0.0, %v129
  %v131 = vpop.f32.mrb[0].mxu0
  %132 = vmatprep.mubr.bf16.mxu0 0
  %133 = vmatmul.mubr.bf16.gmra.mrb[0].mxu0 %v41
  %v134 = vpop.f32.mrb[0].mxu0
  %v135 = vadd.f32 0.0, %v134
  %v136 = vpop.f32.mrb[0].mxu0
  %v137 = vpop.f32.mrb[0].mxu0
  %v138 = vadd.f32 0.0, %v137
  %v139 = vpop.f32.mrb[0].mxu0
  %140 = vdwg.mxu0
  %vm141 = vcmp.ge.f32.partialorder %v127, 0.0
  %vm142 = vcmp.ge.f32.partialorder %v130, 0.0
  %vm143 = vcmp.ge.f32.partialorder %v135, 0.0
  %vm144 = vcmp.ge.f32.partialorder %v138, 0.0
  %v145 = vmul.f32 %v127, 0.2
  %v146 = vmul.f32 %v130, 0.2
  %v147 = vmul.f32 %v135, 0.2
  %v148 = vmul.f32 %v138, 0.2
  %v149 = vsel %vm141, %v127, %v145
  %v150 = vsel %vm142, %v130, %v146
  %v151 = vsel %vm143, %v135, %v147
  %v152 = vsel %vm144, %v138, %v148
  %v153 = vpack.c.bf16 %v150, %v149
  %v154 = vpack.c.bf16 %v152, %v151
  %v157 = vunpack.c.l.b16 %v153
  %v158 = vunpack.c.h.b16 %v153
  %v159 = vunpack.c.l.b16 %v154
  %v160 = vunpack.c.h.b16 %v154
  %v161 = vpack.c.b16 %v157, %v157
  %v162 = vpack.c.b16 %v158, %v158
  %v163 = vpack.c.b16 %v159, %v159
  %v164 = vpack.c.b16 %v160, %v160
  %vm169 = vcmask 125952
  %170 = vst.msk [vmem:[%s2] sm:$0xf] %vm169, %v161
  %171 = vst.msk [vmem:[%s2 + $0x4] sm:$0xf] %vm169, %v162
  %172 = vst.msk [vmem:[%s2 + $0x8] sm:$0xf] %vm169, %v163
  %173 = vst.msk [vmem:[%s2 + $0xc] sm:$0xf] %vm169, %v164
  // Predicated region
  $region10: #{tpu_custom_call.1} parent=0 // pred_check
    _
  $region11: #{tpu_custom_call.1} parent=0 // pred_check_branch
    %175 = sbr.rel (0) target = $region13
  $region12: #{tpu_custom_call.1} parent=0 // pred_region
    _
  $region13: #{tpu_custom_call.1} parent=0 // pred_fallthru
    _
  // Predicated region
  $region14: #{tpu_custom_call.1} parent=0 // pred_check
    _
  $region15: #{tpu_custom_call.1} parent=0 // pred_check_branch
    %177 = sbr.rel (0) target = $region17
  $region16: #{tpu_custom_call.1} parent=0 // pred_region
    _
  $region17: #{tpu_custom_call.1} parent=0 // pred_fallthru
    _

</llo_original>
